<compile_context>
chip_gen: v6e
topology: v6e:2x2x1
jax: 0.10.0
libtpu: 0.0.40
codegen_flags: <defaults>
</compile_context>

<pallas_src>
import jax
import jax.numpy as jnp
from jax import lax
from jax.experimental import pallas as pl
from jax.experimental.pallas import tpu as pltpu  # noqa: F401  (kept for TPU-specific tuning hooks)

PAD = 6


# ----------------------------- Pallas kernel ------------------------------ #
def _token_cls_select_kernel(ids_ref, wv3_ref, b_ref, o_ref):
    # ids_ref : (1, B*S_crop) int32   cropped query-row token ids, batch folded into lanes
    # wv3_ref : (3, L, V)    bfloat16 exact 3-term bf16 split of wv = W @ E^T (f32)
    # b_ref   : (L, 1)       float32  classifier bias (lane-broadcast direction)
    # o_ref   : (B, L, S_crop) float32 logits, already cropped + transposed
    ids = ids_ref[...]                                        # (1, BS)
    v_size = wv3_ref.shape[2]
    bs = ids.shape[1]

    # Exact one-hot on the MXU: onehot[v, s] = (ids[s] == v); 0/1 are exact in bf16.
    iota_v = lax.broadcasted_iota(jnp.int32, (v_size, bs), 0)
    onehot = (iota_v == ids).astype(jnp.float32).astype(jnp.bfloat16)   # (V, BS)

    # Selection via three native single-pass bf16 MXU matmuls with f32 accumulation.
    # Since only one one-hot entry per column is nonzero, each dot selects the
    # corresponding hi/mid/lo term exactly; hi + mid + lo reconstructs the f32
    # wv entry exactly, so the result is bit-exact to gather-then-Linear.
    acc = jnp.dot(wv3_ref[0], onehot, preferred_element_type=jnp.float32)
    acc = acc + jnp.dot(wv3_ref[1], onehot, preferred_element_type=jnp.float32)
    acc = acc + jnp.dot(wv3_ref[2], onehot, preferred_element_type=jnp.float32)
    logits = acc + b_ref[...]                                 # (L, BS) + (L, 1)

    b_dim, _, s_crop = o_ref.shape
    for b in range(b_dim):                                    # static, unrolled per-batch stores
        o_ref[b] = logits[:, b * s_crop:(b + 1) * s_crop]


def token_cls_pallas(ids_flat, wv3, bias2d, batch, s_crop):
    """ids_flat: (1, B*S_crop) int32; wv3: (3, L, V) bf16; bias2d: (L, 1) f32
       -> logits (B, L, S_crop) float32 (already cropped + transposed)."""
    _, bs = ids_flat.shape
    _, num_labels, v_size = wv3.shape
    return pl.pallas_call(
        _token_cls_select_kernel,
        out_shape=jax.ShapeDtypeStruct((batch, num_labels, s_crop), jnp.float32),
        grid=(1,),                                            # single step: whole batch at once
        in_specs=[
            pl.BlockSpec((1, bs), lambda i: (0, 0)),
            pl.BlockSpec((3, num_labels, v_size), lambda i: (0, 0, 0)),
            pl.BlockSpec((num_labels, 1), lambda i: (0, 0)),
        ],
        out_specs=pl.BlockSpec((batch, num_labels, s_crop), lambda i: (0, 0, 0)),
    )(ids_flat, wv3, bias2d)


# ------------------------------ full forward ------------------------------ #
def _split_f32_to_3x_bf16(x):
    """Exact 3-term bf16 decomposition of a float32 array: hi + mid + lo == x."""
    hi = x.astype(jnp.bfloat16)
    r1 = x - hi.astype(jnp.float32)
    mid = r1.astype(jnp.bfloat16)
    lo = (r1 - mid.astype(jnp.float32)).astype(jnp.bfloat16)
    return jnp.stack([hi, mid, lo], axis=0)                   # (3, ...) bf16


def rna_msm_for_token_cls(input_ids, params):
    """input_ids: (B, A, S) int32 MSA tokens -> logits (B, num_labels, S - 1 - 2*PAD)."""
    B, _, S = input_ids.shape
    if S <= 1 + 2 * PAD:
        raise ValueError(f"sequence length {S} too short for the [1+{PAD}:-{PAD}] crop")
    s_crop = S - 1 - 2 * PAD

    # TODO(synk): the real RNA-MSM `bert` backbone is external to the wrapped module;
    # its layer-10 query-row representations are synthesized with a deterministic
    # embedding table, and that lookup is fused into the kernel as a one-hot matmul.
    ids_query = input_ids[:, 0, 1 + PAD:S - PAD].astype(jnp.int32)       # (B, S_crop)
    ids_flat = ids_query.reshape(1, B * s_crop)                          # batch folded into lanes

    # Batch-invariant hoist: classifier applied to the whole embedding table, computed
    # ONCE per call in f32 by XLA instead of per grid step on the in-kernel MXU.
    wv = jnp.dot(params["cls_w"], params["embedding"].T,
                 preferred_element_type=jnp.float32,
                 precision=lax.Precision.HIGHEST)                        # (L, V) f32
    wv3 = _split_f32_to_3x_bf16(wv)                                      # (3, L, V) bf16, exact
    bias2d = params["cls_b"].reshape(-1, 1)                              # (L, 1)

    return token_cls_pallas(ids_flat, wv3, bias2d, B, s_crop)


def init_params(key, vocab_size, hidden_size, num_labels):
    k_emb, k_w, k_b = jax.random.split(key, 3)
    return {
        "embedding": jax.random.normal(k_emb, (vocab_size, hidden_size), jnp.float32) * 0.02,
        "cls_w": jax.random.normal(k_w, (num_labels, hidden_size), jnp.float32) * 0.02,
        "cls_b": jax.random.normal(k_b, (num_labels,), jnp.float32) * 0.02,
    }


if __name__ == "__main__":
    # Small shapes consistent with the forward pass (S must exceed 1 + 2*PAD = 13).
    B, A, S, H, L, V = 2, 4, 32, 32, 3, 26
    key = jax.random.PRNGKey(0)
    k_ids, k_params = jax.random.split(key)

    input_ids = jax.random.randint(k_ids, (B, A, S), 0, V, dtype=jnp.int32)
    params = init_params(k_params, V, H, L)

    out = jax.jit(rna_msm_for_token_cls)(input_ids, params)
    out = jax.block_until_ready(out)

    # Pure-JAX reference of the whole forward (gather -> Linear -> crop -> transpose).
    reps = params["embedding"][input_ids][:, 0, :, :]                        # (B, S, H)
    ref = jnp.einsum("bsh,lh->bsl", reps, params["cls_w"],
                     precision=jax.lax.Precision.HIGHEST) + params["cls_b"]  # (B, S, L)
    ref = jnp.transpose(ref[:, 1 + PAD:-PAD, :], (0, 2, 1))                  # (B, L, S_crop)

    assert out.shape == (B, L, S - 1 - 2 * PAD), out.shape
    assert jnp.allclose(out, ref, atol=1e-5, rtol=1e-5), \
        float(jnp.max(jnp.abs(out - ref)))

    print("KERNEL_OK")
</pallas_src>

<mosaic_0001>
module attributes {stable_mosaic.version = 11 : i64} {
  func.func @_token_cls_select_kernel(%arg0: i32, %arg1: memref<1x38xi32, #tpu.memory_space<vmem>>, %arg2: memref<3x3x26xbf16, #tpu.memory_space<vmem>>, %arg3: memref<3x1xf32, #tpu.memory_space<vmem>>, %arg4: memref<2x3x19xf32, #tpu.memory_space<vmem>>) attributes {dimension_semantics = [#tpu.dimension_semantics<arbitrary>], iteration_bounds = array<i64: 1>, scalar_prefetch = 0 : i64, scratch_operands = 0 : i64, tpu.core_type = #tpu.core_type<tc>, window_params = [{pipeline_mode = #tpu.pipeline_mode<synchronous>, transform_indices = @transform_0, window_bounds = array<i64: 1, 38>}, {pipeline_mode = #tpu.pipeline_mode<synchronous>, transform_indices = @transform_1, window_bounds = array<i64: 3, 3, 26>}, {pipeline_mode = #tpu.pipeline_mode<synchronous>, transform_indices = @transform_2, window_bounds = array<i64: 3, 1>}, {pipeline_mode = #tpu.pipeline_mode<synchronous>, transform_indices = @transform_3, window_bounds = array<i64: 2, 3, 19>}]} {
    %c0 = arith.constant 0 : index
    %c0_0 = arith.constant 0 : index
    %0 = vector.load %arg1[%c0, %c0_0] : memref<1x38xi32, #tpu.memory_space<vmem>>, vector<1x38xi32>
    %1 = tpu.iota {dimensions = array<i32: 0>} : vector<26x38xi32>
    %2 = vector.broadcast %0 : vector<1x38xi32> to vector<26x38xi32>
    %3 = arith.cmpi eq, %1, %2 : vector<26x38xi32>
    %4 = arith.extui %3 : vector<26x38xi1> to vector<26x38xi32>
    %5 = arith.sitofp %4 : vector<26x38xi32> to vector<26x38xf32>
    %6 = arith.truncf %5 : vector<26x38xf32> to vector<26x38xbf16>
    %c0_1 = arith.constant 0 : index
    %c0_2 = arith.constant 0 : index
    %c0_3 = arith.constant 0 : index
    %7 = vector.load %arg2[%c0_1, %c0_2, %c0_3] : memref<3x3x26xbf16, #tpu.memory_space<vmem>>, vector<1x3x26xbf16>
    %8 = vector.shape_cast %7 : vector<1x3x26xbf16> to vector<3x26xbf16>
    %cst = arith.constant dense<0.000000e+00> : vector<3x38xf32>
    %9 = tpu.matmul %8, %6, %cst {dimension_numbers = #tpu.dot_dimension_numbers<[1], [0], [0], [1], [0, 0, 1, 1], [], []>} : vector<3x26xbf16>, vector<26x38xbf16>, vector<3x38xf32> -> vector<3x38xf32>
    %c1 = arith.constant 1 : index
    %c0_4 = arith.constant 0 : index
    %c0_5 = arith.constant 0 : index
    %10 = vector.load %arg2[%c1, %c0_4, %c0_5] : memref<3x3x26xbf16, #tpu.memory_space<vmem>>, vector<1x3x26xbf16>
    %11 = vector.shape_cast %10 : vector<1x3x26xbf16> to vector<3x26xbf16>
    %cst_6 = arith.constant dense<0.000000e+00> : vector<3x38xf32>
    %12 = tpu.matmul %11, %6, %cst_6 {dimension_numbers = #tpu.dot_dimension_numbers<[1], [0], [0], [1], [0, 0, 1, 1], [], []>} : vector<3x26xbf16>, vector<26x38xbf16>, vector<3x38xf32> -> vector<3x38xf32>
    %13 = arith.addf %9, %12 : vector<3x38xf32>
    %c2 = arith.constant 2 : index
    %c0_7 = arith.constant 0 : index
    %c0_8 = arith.constant 0 : index
    %14 = vector.load %arg2[%c2, %c0_7, %c0_8] : memref<3x3x26xbf16, #tpu.memory_space<vmem>>, vector<1x3x26xbf16>
    %15 = vector.shape_cast %14 : vector<1x3x26xbf16> to vector<3x26xbf16>
    %cst_9 = arith.constant dense<0.000000e+00> : vector<3x38xf32>
    %16 = tpu.matmul %15, %6, %cst_9 {dimension_numbers = #tpu.dot_dimension_numbers<[1], [0], [0], [1], [0, 0, 1, 1], [], []>} : vector<3x26xbf16>, vector<26x38xbf16>, vector<3x38xf32> -> vector<3x38xf32>
    %17 = arith.addf %13, %16 : vector<3x38xf32>
    %c0_10 = arith.constant 0 : index
    %c0_11 = arith.constant 0 : index
    %18 = vector.load %arg3[%c0_10, %c0_11] : memref<3x1xf32, #tpu.memory_space<vmem>>, vector<3x1xf32>
    %19 = vector.broadcast %18 : vector<3x1xf32> to vector<3x38xf32>
    %20 = arith.addf %17, %19 : vector<3x38xf32>
    %21 = vector.extract_strided_slice %20 {offsets = [0, 0], sizes = [3, 19], strides = [1, 1]} : vector<3x38xf32> to vector<3x19xf32>
    %c0_12 = arith.constant 0 : index
    %c0_13 = arith.constant 0 : index
    %c0_14 = arith.constant 0 : index
    %22 = vector.load %arg4[%c0_12, %c0_13, %c0_14] : memref<2x3x19xf32, #tpu.memory_space<vmem>>, vector<1x3x19xf32>
    %23 = vector.shape_cast %22 : vector<1x3x19xf32> to vector<3x19xf32>
    %24 = vector.shape_cast %21 : vector<3x19xf32> to vector<1x3x19xf32>
    tpu.vector_store %arg4[%c0_12, %c0_13, %c0_14], %24 {strides = array<i32>} : memref<2x3x19xf32, #tpu.memory_space<vmem>>, vector<1x3x19xf32>,
    %25 = vector.extract_strided_slice %20 {offsets = [0, 19], sizes = [3, 19], strides = [1, 1]} : vector<3x38xf32> to vector<3x19xf32>
    %c1_15 = arith.constant 1 : index
    %c0_16 = arith.constant 0 : index
    %c0_17 = arith.constant 0 : index
    %26 = vector.load %arg4[%c1_15, %c0_16, %c0_17] : memref<2x3x19xf32, #tpu.memory_space<vmem>>, vector<1x3x19xf32>
    %27 = vector.shape_cast %26 : vector<1x3x19xf32> to vector<3x19xf32>
    %28 = vector.shape_cast %25 : vector<3x19xf32> to vector<1x3x19xf32>
    tpu.vector_store %arg4[%c1_15, %c0_16, %c0_17], %28 {strides = array<i32>} : memref<2x3x19xf32, #tpu.memory_space<vmem>>, vector<1x3x19xf32>,
    return
  }
  func.func @transform_0(%arg0: i32) -> (i32, i32) {
    %c0_i32 = arith.constant 0 : i32
    %c0_i32_0 = arith.constant 0 : i32
    %c0_i32_1 = arith.constant 0 : i32
    return %c0_i32, %c0_i32_0 : i32, i32
  }
  func.func @transform_1(%arg0: i32) -> (i32, i32, i32) {
    %c0_i32 = arith.constant 0 : i32
    %c0_i32_0 = arith.constant 0 : i32
    %c0_i32_1 = arith.constant 0 : i32
    %c0_i32_2 = arith.constant 0 : i32
    return %c0_i32, %c0_i32_0, %c0_i32_1 : i32, i32, i32
  }
  func.func @transform_2(%arg0: i32) -> (i32, i32) {
    %c0_i32 = arith.constant 0 : i32
    %c0_i32_0 = arith.constant 0 : i32
    %c0_i32_1 = arith.constant 0 : i32
    return %c0_i32, %c0_i32_0 : i32, i32
  }
  func.func @transform_3(%arg0: i32) -> (i32, i32, i32) {
    %c0_i32 = arith.constant 0 : i32
    %c0_i32_0 = arith.constant 0 : i32
    %c0_i32_1 = arith.constant 0 : i32
    %c0_i32_2 = arith.constant 0 : i32
    return %c0_i32, %c0_i32_0, %c0_i32_1 : i32, i32, i32
  }
}

</mosaic_0001>

<llo_original>
// kernel: squeeze.1
$region0: #{squeeze.1}
  %s0 = inlined_call_operand.vmem [shape: s32[2,19], index: 0, kind: input, shape index: {}]
  %s1 = inlined_call_operand.vmem [shape: s32[1,38], index: 1, kind: output, shape index: {}]
  $region1: #{squeeze.1} parent=0
    #allocation0 [shape = 'u8[4096]{0}', space=vmem, size = 0x1000, scoped, tag = 'scoped mem for output reshape']
    #allocation1 [shape = 'u8[4096]{0}', space=vmem, size = 0x1000, scoped, tag = 'scoped mem for input reshape']
    %s3 = sshll.u32 1, 2
    %s4 = ssub.s32 %s3, 1
    %v5 = vld [vmem:[%s0] sm:%s4]
    %6 = vst [vmem:[#allocation1] sm:%s4] %v5
    %v7 = vld [vmem:[#allocation1] sm:$0x1]
    %vm8 = vcmask 154624
    %9 = vst.msk [vmem:[#allocation0] sm:$0x1] %vm8, %v7
    %s10 = scalar_lea.vmem [#allocation1], 1
    %v11 = vld [vmem:[%s10] sm:$0x1]
    %12 = vrot.lane.b32.xlu0 %v11, 19
    %v13 = vpop.permute.xlu0 %12
    %vm14 = vcmask 310424
    %15 = vst.msk [vmem:[#allocation0] sm:$0x1] %vm14, %v13
    %s17 = sshll.u32 1, 1
    %s18 = ssub.s32 %s17, 1
    %v20 = vld [vmem:[#allocation0] sm:%s18]
    %s21 = sshll.u32 1, 1
    %s22 = ssub.s32 %s21, 1
    %23 = vst [vmem:[%s1] sm:%s22] %v20

// kernel: rna_msm_for_token_cls.1
$region0: #{rna_msm_for_token_cls.1}
  #allocation0 [shape = 'u32[]', space=smem, size = 0x4, offset = 0x4, fixed_abs, tag = 'smem constant byte address 0x4 - core index']
  #allocation1 [shape = 'u32[144,128]{1,0:T(1,128)}', space=vmem, size = 0x12000, scoped, tag = 'internal scratch']
  %s0 = inlined_call_operand.vmem [shape: s32[1,38], index: 0, kind: input, shape index: {}]
  %s1 = inlined_call_operand.vmem [shape: bf16[3,3,26], index: 1, kind: input, shape index: {}]
  %s2 = inlined_call_operand.vmem [shape: f32[3,1], index: 2, kind: input, shape index: {}]
  %s3 = inlined_call_operand.vmem [shape: f32[2,3,19], index: 3, kind: output, shape index: {}]
  %s4 = sld [smem:[#allocation0]]
  $region22: #{rna_msm_for_token_cls.1} parent=0
    _
  %s6 = ssub.s32 1, %s4
  %s7 = scalar_select 0, %s6, %s4
  // Predicated region
  $region2: #{rna_msm_for_token_cls.1} parent=0 // pred_check
    _
  $region3: #{rna_msm_for_token_cls.1} parent=0 // pred_check_branch
    %9 = sbr.rel (0) target = $region5
  $region4: #{rna_msm_for_token_cls.1} parent=0 // pred_region
    _
  $region5: #{rna_msm_for_token_cls.1} parent=0 // pred_fallthru
    _
  // Predicated region
  $region6: #{rna_msm_for_token_cls.1} parent=0 // pred_check
    _
  $region7: #{rna_msm_for_token_cls.1} parent=0 // pred_check_branch
    %11 = sbr.rel (0) target = $region9
  $region8: #{rna_msm_for_token_cls.1} parent=0 // pred_region
    _
  $region9: #{rna_msm_for_token_cls.1} parent=0 // pred_fallthru
    _
  // Predicated region
  $region10: #{rna_msm_for_token_cls.1} parent=0 // pred_check
    _
  $region11: #{rna_msm_for_token_cls.1} parent=0 // pred_check_branch
    %13 = sbr.rel (0) target = $region13
  $region12: #{rna_msm_for_token_cls.1} parent=0 // pred_region
    _
  $region13: #{rna_msm_for_token_cls.1} parent=0 // pred_fallthru
    _
  %v15 = vld [vmem:[%s0] sm:$0x1]
  %v16 = vlaneseq
  %v17 = vshrl.u32 %v16, 7
  %v18 = vadd.s32 %v17, 8
  %v19 = vadd.s32 %v17, 16
  %v20 = vadd.s32 %v17, 24
  %v21 = vlaneseq
  %v22 = vshrl.u32 %v21, 7
  %v23 = vsub.s32 0, %v22
  %v24 = vrot.slane %v15, %v23
  %vm25 = vcmp.eq.s32.totalorder %v17, %v24
  %vm26 = vcmp.eq.s32.totalorder %v18, %v24
  %vm27 = vcmp.eq.s32.totalorder %v19, %v24
  %vm28 = vcmp.eq.s32.totalorder %v20, %v24
  %v29 = vsel %vm25, 1, 0
  %v30 = vsel %vm26, 1, 0
  %v31 = vsel %vm27, 1, 0
  %v32 = vsel %vm28, 1, 0
  %v33 = vcvt.s32.f32 %v29
  %v34 = vcvt.s32.f32 %v30
  %v35 = vcvt.s32.f32 %v31
  %v36 = vcvt.s32.f32 %v32
  %v37 = vpack.c.bf16 %v34, %v33
  %v38 = vpack.c.bf16 %v36, %v35
  %v39 = vld [vmem:[%s1] sm:$0x3]
  %s40 = scalar_lea.vmem %s1, 2
  %v41 = vld [vmem:[%s40] sm:$0x3]
  %vm42 = vcmask 211968
  %v44 = vsel %vm42, %v41, 0
  %vm46 = vcmask 1044480
  %v48 = vsel %vm46, %v38, 0
  %50 = vmatprep.subr.bf16.mxu0 0
  %51 = vmatpush1.bf16.msra.mxu0 0
  %52 = vmatprep.subr.bf16.mxu0 0
  %53 = vmatpush1.bf16.msra.mxu0 0
  %54 = vmatprep.subr.bf16.mxu0 0
  %55 = vmatpush1.bf16.msra.mxu0 0
  %56 = vmatprep.subr.bf16.mxu0 0
  %57 = vmatpush1.bf16.msra.mxu0 0
  %58 = vmatprep.subr.bf16.mxu0 0
  %59 = vmatpush1.bf16.msra.mxu0 0
  %60 = vmatprep.subr.bf16.mxu0 0
  %61 = vmatpush1.bf16.msra.mxu0 0
  %62 = vmatprep.subr.bf16.mxu0 0
  %63 = vmatpush1.bf16.msra.mxu0 %v48
  %64 = vmatprep.subr.bf16.mxu0 0
  %65 = vmatpush1.bf16.msra.mxu0 %v37
  %66 = vmatprep.subr.bf16.mxu0 0
  %67 = vmatpush2.bf16.msra.mxu0 0
  %68 = vmatprep.subr.bf16.mxu0 0
  %69 = vmatpush2.bf16.msra.mxu0 0
  %70 = vmatprep.subr.bf16.mxu0 0
  %71 = vmatpush2.bf16.msra.mxu0 0
  %72 = vmatprep.subr.bf16.mxu0 0
  %73 = vmatpush2.bf16.msra.mxu0 0
  %74 = vmatprep.subr.bf16.mxu0 0
  %75 = vmatpush2.bf16.msra.mxu0 0
  %76 = vmatprep.subr.bf16.mxu0 0
  %77 = vmatpush2.bf16.msra.mxu0 0
  %78 = vmatprep.subr.bf16.mxu0 0
  %79 = vmatpush2.bf16.msra.mxu0 0
  %80 = vmatprep.subr.bf16.mxu0 0
  %81 = vmatpush2.bf16.msra.mxu0 0
  %82 = vmatprep.mubr.bf16.mxu0 0
  %83 = vmatmul.mubr.bf16.gmra.mxu0 %v44
  %v84 = vpop.f32.mrf.mxu0
  %v85 = vadd.f32 0.0, %v84
  %v86 = vpop.f32.mrf.mxu0
  %v87 = vpop.f32.mrf.mxu0
  %v88 = vpop.f32.mrf.mxu0
  %89 = vdwg.mxu0
  %v91 = vsel %vm42, %v39, 0
  %93 = vmatprep.subr.bf16.mxu0 0
  %94 = vmatpush1.bf16.msra.mxu0 0
  %95 = vmatprep.subr.bf16.mxu0 0
  %96 = vmatpush1.bf16.msra.mxu0 0
  %97 = vmatprep.subr.bf16.mxu0 0
  %98 = vmatpush1.bf16.msra.mxu0 0
  %99 = vmatprep.subr.bf16.mxu0 0
  %100 = vmatpush1.bf16.msra.mxu0 0
  %101 = vmatprep.subr.bf16.mxu0 0
  %102 = vmatpush1.bf16.msra.mxu0 0
  %103 = vmatprep.subr.bf16.mxu0 0
  %104 = vmatpush1.bf16.msra.mxu0 0
  %105 = vmatprep.subr.bf16.mxu0 0
  %106 = vmatpush1.bf16.msra.mxu0 %v48
  %107 = vmatprep.subr.bf16.mxu0 0
  %108 = vmatpush1.bf16.msra.mxu0 %v37
  %109 = vmatprep.subr.bf16.mxu0 0
  %110 = vmatpush2.bf16.msra.mxu0 0
  %111 = vmatprep.subr.bf16.mxu0 0
  %112 = vmatpush2.bf16.msra.mxu0 0
  %113 = vmatprep.subr.bf16.mxu0 0
  %114 = vmatpush2.bf16.msra.mxu0 0
  %115 = vmatprep.subr.bf16.mxu0 0
  %116 = vmatpush2.bf16.msra.mxu0 0
  %117 = vmatprep.subr.bf16.mxu0 0
  %118 = vmatpush2.bf16.msra.mxu0 0
  %119 = vmatprep.subr.bf16.mxu0 0
  %120 = vmatpush2.bf16.msra.mxu0 0
  %121 = vmatprep.subr.bf16.mxu0 0
  %122 = vmatpush2.bf16.msra.mxu0 0
  %123 = vmatprep.subr.bf16.mxu0 0
  %124 = vmatpush2.bf16.msra.mxu0 0
  %125 = vmatprep.mubr.bf16.mxu0 0
  %126 = vmatmul.mubr.bf16.gmra.mxu0 %v91
  %v127 = vpop.f32.mrf.mxu0
  %v128 = vadd.f32 %v85, %v127
  %v129 = vpop.f32.mrf.mxu0
  %v130 = vpop.f32.mrf.mxu0
  %v131 = vpop.f32.mrf.mxu0
  %132 = vdwg.mxu0
  %s133 = scalar_lea.vmem %s1, 4
  %v134 = vld [vmem:[%s133] sm:$0x3]
  %v136 = vsel %vm42, %v134, 0
  %138 = vmatprep.subr.bf16.mxu0 0
  %139 = vmatpush1.bf16.msra.mxu0 0
  %140 = vmatprep.subr.bf16.mxu0 0
  %141 = vmatpush1.bf16.msra.mxu0 0
  %142 = vmatprep.subr.bf16.mxu0 0
  %143 = vmatpush1.bf16.msra.mxu0 0
  %144 = vmatprep.subr.bf16.mxu0 0
  %145 = vmatpush1.bf16.msra.mxu0 0
  %146 = vmatprep.subr.bf16.mxu0 0
  %147 = vmatpush1.bf16.msra.mxu0 0
  %148 = vmatprep.subr.bf16.mxu0 0
  %149 = vmatpush1.bf16.msra.mxu0 0
  %150 = vmatprep.subr.bf16.mxu0 0
  %151 = vmatpush1.bf16.msra.mxu0 %v48
  %152 = vmatprep.subr.bf16.mxu0 0
  %153 = vmatpush1.bf16.msra.mxu0 %v37
  %154 = vmatprep.subr.bf16.mxu0 0
  %155 = vmatpush2.bf16.msra.mxu0 0
  %156 = vmatprep.subr.bf16.mxu0 0
  %157 = vmatpush2.bf16.msra.mxu0 0
  %158 = vmatprep.subr.bf16.mxu0 0
  %159 = vmatpush2.bf16.msra.mxu0 0
  %160 = vmatprep.subr.bf16.mxu0 0
  %161 = vmatpush2.bf16.msra.mxu0 0
  %162 = vmatprep.subr.bf16.mxu0 0
  %163 = vmatpush2.bf16.msra.mxu0 0
  %164 = vmatprep.subr.bf16.mxu0 0
  %165 = vmatpush2.bf16.msra.mxu0 0
  %166 = vmatprep.subr.bf16.mxu0 0
  %167 = vmatpush2.bf16.msra.mxu0 0
  %168 = vmatprep.subr.bf16.mxu0 0
  %169 = vmatpush2.bf16.msra.mxu0 0
  %170 = vmatprep.mubr.bf16.mxu0 0
  %171 = vmatmul.mubr.bf16.gmra.mxu0 %v136
  %v172 = vpop.f32.mrf.mxu0
  %v173 = vadd.f32 0.0, %v172
  %v174 = vpop.f32.mrf.mxu0
  %v175 = vpop.f32.mrf.mxu0
  %v176 = vpop.f32.mrf.mxu0
  %177 = vdwg.mxu0
  %v178 = vadd.f32 %v128, %v173
  %v179 = vld [vmem:[%s2] sm:$0x7]
  %181 = vset.pattern.permute.xlu0 0
  %182 = vperm.xlu0 %181, %v179
  %v183 = vpop.permute.xlu0 %182
  %v185 = vadd.f32 %v178, %v183
  %vm186 = vcmask 149504
  %187 = vst.msk [vmem:[%s3] sm:$0x7] %vm186, %v185
  %189 = vrot.lane.b32.xlu0 %v185, 109
  %v190 = vpop.permute.xlu0 %189
  %s192 = scalar_lea.vmem %s3, 4
  %193 = vst.msk [vmem:[%s192] sm:$0x7] %vm186, %v190
  // Predicated region
  $region14: #{rna_msm_for_token_cls.1} parent=0 // pred_check
    _
  $region15: #{rna_msm_for_token_cls.1} parent=0 // pred_check_branch
    %195 = sbr.rel (0) target = $region17
  $region16: #{rna_msm_for_token_cls.1} parent=0 // pred_region
    _
  $region17: #{rna_msm_for_token_cls.1} parent=0 // pred_fallthru
    _
  // Predicated region
  $region18: #{rna_msm_for_token_cls.1} parent=0 // pred_check
    _
  $region19: #{rna_msm_for_token_cls.1} parent=0 // pred_check_branch
    %197 = sbr.rel (0) target = $region21
  $region20: #{rna_msm_for_token_cls.1} parent=0 // pred_region
    _
  $region21: #{rna_msm_for_token_cls.1} parent=0 // pred_fallthru
    _

</llo_original>
